<compile_context>
chip_gen: v7x
topology: tpu7x:2x2x1
jax: 0.10.0
libtpu: 0.0.40
codegen_flags: <defaults>
</compile_context>

<pallas_src>
import functools

import jax
import jax.numpy as jnp
from jax.experimental import pallas as pl
from jax.experimental.pallas import tpu as pltpu

IN = 3        # input features
INA = IN + 1  # input features + folded-bias ones row
H1 = 64       # fc1 / fc2 width
OUT = 2       # output features


def _mlp_kernel(xt_ref, w1_ref, w2_ref, w3_ref, b_ref, ot_ref):
    """One batch tile. Activations are [features, TB] (batch on the lane axis)."""
    xt = xt_ref[...]                        # (4,  TB) bf16 (last row is ones)
    b2 = b_ref[:, 0:1]                      # (64, 1)  f32
    b3 = b_ref[0:OUT, 1:2]                  # (2,  1)  f32

    # fc1 (+ b1 folded into w1): single bf16 MXU pass, f32 accumulate, ReLU on VPU (f32).
    h1 = jnp.dot(w1_ref[...], xt, preferred_element_type=jnp.float32)
    h1 = jnp.maximum(h1, 0.0)               # (64, TB) f32

    # fc2: bf16 MXU inputs (w2 pre-cast in the wrapper), f32 accumulate.
    h2 = jnp.dot(w2_ref[...], h1.astype(jnp.bfloat16),
                 preferred_element_type=jnp.float32)
    h2 = jnp.maximum(h2 + b2, 0.0)          # (64, TB) f32

    # fc3: (2,64) @ (64,TB) + b3 (no activation; lane-dense store).
    h3 = jnp.dot(w3_ref[...], h2.astype(jnp.bfloat16),
                 preferred_element_type=jnp.float32)
    ot_ref[...] = (h3 + b3).astype(ot_ref.dtype)   # (2, TB)


def _round_up(n, m):
    return ((n + m - 1) // m) * m


@functools.partial(jax.jit, static_argnames=("tb",))
def algae_mussel_forward(x, params, *, tb=8192):
    """x: [B, 3] float32. params: PyTorch-convention weights w* [out,in], biases b* [out,1]."""
    B = x.shape[0]
    w1, w2, w3 = params["w1"], params["w2"], params["w3"]
    b1, b2, b3 = params["b1"], params["b2"], params["b3"]

    # ---- tile / grid selection ---------------------------------------------
    b128 = _round_up(B, 128)
    # Cap at 8192 so live (64, tb) intermediates stay << v5e's 16 MiB scoped-VMEM
    # default (raise vmem_limit_bytes via CompilerParams if you push past this).
    tbl = max(128, min(int(tb), 8192))
    tbl = (tbl // 128) * 128
    if tbl >= b128:
        # Tile would cover the whole batch: split into two tiles when possible so
        # v7x's 2 TensorCores both get work (the grid axis is "parallel").
        tbl = max(128, _round_up(b128, 256) // 2)
    bp = _round_up(B, tbl)
    grid = (bp // tbl,)

    # ---- operand packing (fuses into single XLA copies under jit) -----------
    ones = jnp.ones((B, 1), jnp.float32)
    x_aug = jnp.concatenate([x.astype(jnp.float32), ones], axis=1)     # (B, 4)
    x_pad = jnp.pad(x_aug, ((0, bp - B), (0, 0)))                      # (bp, 4)
    xt = x_pad.T.astype(jnp.bfloat16)                                  # (4, bp): batch on lanes

    w1b = jnp.concatenate([w1, b1], axis=1).astype(jnp.bfloat16)       # (64, 4): b1 folded in
    w2b = w2.astype(jnp.bfloat16)                                      # (64, 64)
    w3b = w3.astype(jnp.bfloat16)                                      # (2, 64)

    b_pack = jnp.zeros((H1, 2), jnp.float32)                           # [b2 | b3] packed
    b_pack = b_pack.at[:, 0:1].set(b2).at[:OUT, 1:2].set(b3)

    flops = 2 * bp * (INA * H1 + H1 * H1 + H1 * OUT)
    # (4,bp)/(2,bp) HBM slabs are sublane-padded to 8 rows; account for that.
    bytes_accessed = (8 * bp * 2 + 8 * bp * 4
                      + 2 * (H1 * INA + H1 * H1 + OUT * H1) + 4 * H1 * 2)

    out_t = pl.pallas_call(
        _mlp_kernel,
        out_shape=jax.ShapeDtypeStruct((OUT, bp), jnp.float32),
        grid=grid,
        in_specs=[
            pl.BlockSpec((INA, tbl), lambda i: (0, i)),    # x tile (streamed / pipelined)
            pl.BlockSpec((H1, INA), lambda i: (0, 0)),     # w1|b1 (VMEM-resident, bf16)
            pl.BlockSpec((H1, H1), lambda i: (0, 0)),      # w2 (resident, bf16)
            pl.BlockSpec((OUT, H1), lambda i: (0, 0)),     # w3 (resident, bf16)
            pl.BlockSpec((H1, 2), lambda i: (0, 0)),       # packed b2|b3 (resident, f32)
        ],
        out_specs=pl.BlockSpec((OUT, tbl), lambda i: (0, i)),
        compiler_params=pltpu.CompilerParams(
            dimension_semantics=("parallel",),             # v7x: shard batch tiles over 2 TCs
        ),
        cost_estimate=pl.CostEstimate(
            flops=flops, transcendentals=0, bytes_accessed=bytes_accessed),
    )(xt, w1b, w2b, w3b, b_pack)

    return out_t[:, :B].T                                  # (B, 2)


def init_params(key):
    """PyTorch-default-like init. Weights stored as [out, in], biases as [out, 1]."""
    ks = jax.random.split(key, 6)

    def lin(kw, kb, fan_in, fan_out):
        bound = 1.0 / jnp.sqrt(jnp.float32(fan_in))
        w = jax.random.uniform(kw, (fan_out, fan_in), jnp.float32, -bound, bound)
        b = jax.random.uniform(kb, (fan_out, 1), jnp.float32, -bound, bound)
        return w, b

    w1, b1 = lin(ks[0], ks[1], IN, H1)
    w2, b2 = lin(ks[2], ks[3], H1, H1)
    w3, b3 = lin(ks[4], ks[5], H1, OUT)
    return {"w1": w1, "b1": b1, "w2": w2, "b2": b2, "w3": w3, "b3": b3}


def reference_forward_f32(x, p):
    h = jnp.maximum(x @ p["w1"].T + p["b1"][:, 0], 0.0)
    h = jnp.maximum(h @ p["w2"].T + p["b2"][:, 0], 0.0)
    return h @ p["w3"].T + p["b3"][:, 0]


def reference_forward_matched(x, p):
    """Same mixed-precision recipe as the kernel (bf16 MXU inputs, f32 accumulate,
    b1 folded into w1 via a ones column)."""
    w1b = jnp.concatenate([p["w1"], p["b1"]], axis=1).astype(jnp.bfloat16)   # (64, 4)
    ones = jnp.ones((x.shape[0], 1), jnp.float32)
    xa = jnp.concatenate([x, ones], axis=1).astype(jnp.bfloat16)             # (B, 4)
    h1 = jnp.maximum(jnp.dot(xa, w1b.T, preferred_element_type=jnp.float32), 0.0)
    h2 = jnp.dot(h1.astype(jnp.bfloat16), p["w2"].T.astype(jnp.bfloat16),
                 preferred_element_type=jnp.float32) + p["b2"][:, 0]
    h2 = jnp.maximum(h2, 0.0)
    return jnp.dot(h2.astype(jnp.bfloat16), p["w3"].T.astype(jnp.bfloat16),
                   preferred_element_type=jnp.float32) + p["b3"][:, 0]


if __name__ == "__main__":
    key = jax.random.PRNGKey(0)
    k_param, k_x, k_x2 = jax.random.split(key, 3)

    params = init_params(k_param)

    # Small batch, 3 input covariates (algae / mussel / environment), as in the module.
    B = 8
    x = jax.random.normal(k_x, (B, IN), dtype=jnp.float32)
    out = jax.block_until_ready(algae_mussel_forward(x, params))
    assert out.shape == (B, OUT)
    assert jnp.allclose(out, reference_forward_matched(x, params), atol=5e-3, rtol=5e-3), \
        "mismatch vs matched mixed-precision reference"
    assert jnp.allclose(out, reference_forward_f32(x, params), atol=5e-2, rtol=5e-2), \
        "mismatch vs f32 reference (bf16 tolerance)"

    # Multi-tile path (grid >= 2, batch padding, two TC shards on v7x).
    B2 = 300
    x2 = jax.random.normal(k_x2, (B2, IN), dtype=jnp.float32)
    out2 = jax.block_until_ready(algae_mussel_forward(x2, params))
    assert out2.shape == (B2, OUT)
    assert jnp.allclose(out2, reference_forward_matched(x2, params), atol=5e-3, rtol=5e-3), \
        "multi-tile mismatch vs matched mixed-precision reference"
    assert jnp.allclose(out2, reference_forward_f32(x2, params), atol=5e-2, rtol=5e-2), \
        "multi-tile mismatch vs f32 reference"

    print("KERNEL_OK")
</pallas_src>

<mosaic_0001>
module attributes {stable_mosaic.version = 11 : i64} {
  func.func @_mlp_kernel(%arg0: i32, %arg1: memref<4x128xbf16, #tpu.memory_space<vmem>>, %arg2: memref<64x4xbf16, #tpu.memory_space<vmem>>, %arg3: memref<64x64xbf16, #tpu.memory_space<vmem>>, %arg4: memref<2x64xbf16, #tpu.memory_space<vmem>>, %arg5: memref<64x2xf32, #tpu.memory_space<vmem>>, %arg6: memref<2x128xf32, #tpu.memory_space<vmem>>) attributes {dimension_semantics = [#tpu.dimension_semantics<parallel>], iteration_bounds = array<i64: 1>, scalar_prefetch = 0 : i64, scratch_operands = 0 : i64, tpu.core_type = #tpu.core_type<tc>, window_params = [{transform_indices = @transform_0, window_bounds = array<i64: 4, 128>}, {pipeline_mode = #tpu.pipeline_mode<synchronous>, transform_indices = @transform_1, window_bounds = array<i64: 64, 4>}, {pipeline_mode = #tpu.pipeline_mode<synchronous>, transform_indices = @transform_2, window_bounds = array<i64: 64, 64>}, {pipeline_mode = #tpu.pipeline_mode<synchronous>, transform_indices = @transform_3, window_bounds = array<i64: 2, 64>}, {pipeline_mode = #tpu.pipeline_mode<synchronous>, transform_indices = @transform_4, window_bounds = array<i64: 64, 2>}, {transform_indices = @transform_5, window_bounds = array<i64: 2, 128>}]} {
    %c0 = arith.constant 0 : index
    %c0_0 = arith.constant 0 : index
    %0 = vector.load %arg1[%c0, %c0_0] : memref<4x128xbf16, #tpu.memory_space<vmem>>, vector<4x128xbf16>
    %c0_1 = arith.constant 0 : index
    %c0_2 = arith.constant 0 : index
    %1 = vector.load %arg5[%c0_1, %c0_2] : memref<64x2xf32, #tpu.memory_space<vmem>>, vector<64x1xf32>
    %c0_3 = arith.constant 0 : index
    %c1 = arith.constant 1 : index
    %2 = vector.load %arg5[%c0_3, %c1] : memref<64x2xf32, #tpu.memory_space<vmem>>, vector<2x1xf32>
    %c0_4 = arith.constant 0 : index
    %c0_5 = arith.constant 0 : index
    %3 = vector.load %arg2[%c0_4, %c0_5] : memref<64x4xbf16, #tpu.memory_space<vmem>>, vector<64x4xbf16>
    %cst = arith.constant dense<0.000000e+00> : vector<64x128xf32>
    %4 = tpu.matmul %3, %0, %cst {dimension_numbers = #tpu.dot_dimension_numbers<[1], [0], [0], [1], [0, 0, 1, 1], [], []>} : vector<64x4xbf16>, vector<4x128xbf16>, vector<64x128xf32> -> vector<64x128xf32>
    %cst_6 = arith.constant 0.000000e+00 : f32
    %5 = vector.broadcast %cst_6 : f32 to vector<64x128xf32>
    %6 = arith.maximumf %4, %5 : vector<64x128xf32>
    %c0_7 = arith.constant 0 : index
    %c0_8 = arith.constant 0 : index
    %7 = vector.load %arg3[%c0_7, %c0_8] : memref<64x64xbf16, #tpu.memory_space<vmem>>, vector<64x64xbf16>
    %8 = arith.truncf %6 : vector<64x128xf32> to vector<64x128xbf16>
    %cst_9 = arith.constant dense<0.000000e+00> : vector<64x128xf32>
    %9 = tpu.matmul %7, %8, %cst_9 {dimension_numbers = #tpu.dot_dimension_numbers<[1], [0], [0], [1], [0, 0, 1, 1], [], []>} : vector<64x64xbf16>, vector<64x128xbf16>, vector<64x128xf32> -> vector<64x128xf32>
    %10 = vector.broadcast %1 : vector<64x1xf32> to vector<64x128xf32>
    %11 = arith.addf %9, %10 : vector<64x128xf32>
    %cst_10 = arith.constant 0.000000e+00 : f32
    %12 = vector.broadcast %cst_10 : f32 to vector<64x128xf32>
    %13 = arith.maximumf %11, %12 : vector<64x128xf32>
    %c0_11 = arith.constant 0 : index
    %c0_12 = arith.constant 0 : index
    %14 = vector.load %arg4[%c0_11, %c0_12] : memref<2x64xbf16, #tpu.memory_space<vmem>>, vector<2x64xbf16>
    %15 = arith.truncf %13 : vector<64x128xf32> to vector<64x128xbf16>
    %cst_13 = arith.constant dense<0.000000e+00> : vector<2x128xf32>
    %16 = tpu.matmul %14, %15, %cst_13 {dimension_numbers = #tpu.dot_dimension_numbers<[1], [0], [0], [1], [0, 0, 1, 1], [], []>} : vector<2x64xbf16>, vector<64x128xbf16>, vector<2x128xf32> -> vector<2x128xf32>
    %17 = vector.broadcast %2 : vector<2x1xf32> to vector<2x128xf32>
    %18 = arith.addf %16, %17 : vector<2x128xf32>
    %c0_14 = arith.constant 0 : index
    %c0_15 = arith.constant 0 : index
    %19 = vector.load %arg6[%c0_14, %c0_15] : memref<2x128xf32, #tpu.memory_space<vmem>>, vector<2x128xf32>
    tpu.vector_store %arg6[%c0_14, %c0_15], %18 {strides = array<i32>} : memref<2x128xf32, #tpu.memory_space<vmem>>, vector<2x128xf32>,
    return
  }
  func.func @transform_0(%arg0: i32) -> (i32, i32) {
    %c0_i32 = arith.constant 0 : i32
    %c0_i32_0 = arith.constant 0 : i32
    return %c0_i32, %arg0 : i32, i32
  }
  func.func @transform_1(%arg0: i32) -> (i32, i32) {
    %c0_i32 = arith.constant 0 : i32
    %c0_i32_0 = arith.constant 0 : i32
    %c0_i32_1 = arith.constant 0 : i32
    return %c0_i32, %c0_i32_0 : i32, i32
  }
  func.func @transform_2(%arg0: i32) -> (i32, i32) {
    %c0_i32 = arith.constant 0 : i32
    %c0_i32_0 = arith.constant 0 : i32
    %c0_i32_1 = arith.constant 0 : i32
    return %c0_i32, %c0_i32_0 : i32, i32
  }
  func.func @transform_3(%arg0: i32) -> (i32, i32) {
    %c0_i32 = arith.constant 0 : i32
    %c0_i32_0 = arith.constant 0 : i32
    %c0_i32_1 = arith.constant 0 : i32
    return %c0_i32, %c0_i32_0 : i32, i32
  }
  func.func @transform_4(%arg0: i32) -> (i32, i32) {
    %c0_i32 = arith.constant 0 : i32
    %c0_i32_0 = arith.constant 0 : i32
    %c0_i32_1 = arith.constant 0 : i32
    return %c0_i32, %c0_i32_0 : i32, i32
  }
  func.func @transform_5(%arg0: i32) -> (i32, i32) {
    %c0_i32 = arith.constant 0 : i32
    %c0_i32_0 = arith.constant 0 : i32
    return %c0_i32, %arg0 : i32, i32
  }
}

</mosaic_0001>

<llo_original>
// kernel: algae_mussel_forward.1
$region0: #{algae_mussel_forward.1}
  #allocation0 [shape = 'u32[]', space=smem, size = 0x4, offset = 0x4, fixed_abs, tag = 'smem constant byte address 0x4 - core index']
  #allocation1 [shape = 'u32[144,128]{1,0:T(1,128)}', space=vmem, size = 0x12000, scoped, tag = 'internal scratch']
  %s0 = inlined_call_operand.vmem [shape: bf16[4,128], index: 0, kind: input, shape index: {}]
  %s1 = inlined_call_operand.vmem [shape: bf16[64,4], index: 1, kind: input, shape index: {}]
  %s2 = inlined_call_operand.vmem [shape: bf16[64,64], index: 2, kind: input, shape index: {}]
  %s3 = inlined_call_operand.vmem [shape: bf16[2,64], index: 3, kind: input, shape index: {}]
  %s4 = inlined_call_operand.vmem [shape: f32[64,2], index: 4, kind: input, shape index: {}]
  %s5 = inlined_call_operand.vmem [shape: f32[2,128], index: 5, kind: output, shape index: {}]
  %s6 = sld [smem:[#allocation0]]
  $region30: #{algae_mussel_forward.1} parent=0
    _
  %s8 = ssub.s32 1, %s6
  %s9 = scalar_select 0, %s8, %s6
  // Predicated region
  $region2: #{algae_mussel_forward.1} parent=0 // pred_check
    _
  $region3: #{algae_mussel_forward.1} parent=0 // pred_check_branch
    %11 = sbr.rel (0) target = $region5
  $region4: #{algae_mussel_forward.1} parent=0 // pred_region
    _
  $region5: #{algae_mussel_forward.1} parent=0 // pred_fallthru
    _
  // Predicated region
  $region6: #{algae_mussel_forward.1} parent=0 // pred_check
    _
  $region7: #{algae_mussel_forward.1} parent=0 // pred_check_branch
    %13 = sbr.rel (0) target = $region9
  $region8: #{algae_mussel_forward.1} parent=0 // pred_region
    _
  $region9: #{algae_mussel_forward.1} parent=0 // pred_fallthru
    _
  // Predicated region
  $region10: #{algae_mussel_forward.1} parent=0 // pred_check
    _
  $region11: #{algae_mussel_forward.1} parent=0 // pred_check_branch
    %15 = sbr.rel (0) target = $region13
  $region12: #{algae_mussel_forward.1} parent=0 // pred_region
    _
  $region13: #{algae_mussel_forward.1} parent=0 // pred_fallthru
    _
  // Predicated region
  $region14: #{algae_mussel_forward.1} parent=0 // pred_check
    _
  $region15: #{algae_mussel_forward.1} parent=0 // pred_check_branch
    %17 = sbr.rel (0) target = $region17
  $region16: #{algae_mussel_forward.1} parent=0 // pred_region
    _
  $region17: #{algae_mussel_forward.1} parent=0 // pred_fallthru
    _
  // Predicated region
  $region18: #{algae_mussel_forward.1} parent=0 // pred_check
    _
  $region19: #{algae_mussel_forward.1} parent=0 // pred_check_branch
    %19 = sbr.rel (0) target = $region21
  $region20: #{algae_mussel_forward.1} parent=0 // pred_region
    _
  $region21: #{algae_mussel_forward.1} parent=0 // pred_fallthru
    _
  %v21 = vld [vmem:[%s0] sm:$0x3]
  %v22 = vld [vmem:[%s4] sm:$0xff]
  %v23 = vld [vmem:[%s4 + $0x8] sm:$0xff]
  %v24 = vld [vmem:[%s4 + $0x10] sm:$0xff]
  %v25 = vld [vmem:[%s4 + $0x18] sm:$0xff]
  %v26 = vld [vmem:[%s4 + $0x20] sm:$0xff]
  %v27 = vld [vmem:[%s4 + $0x28] sm:$0xff]
  %v28 = vld [vmem:[%s4 + $0x30] sm:$0xff]
  %v29 = vld [vmem:[%s4 + $0x38] sm:$0xff]
  %v30 = vld [vmem:[%s4] sm:$0x3]
  %v31 = vld [vmem:[%s1] sm:$0xf]
  %v32 = vld [vmem:[%s1 + $0x4] sm:$0xf]
  %v33 = vld [vmem:[%s1 + $0x8] sm:$0xf]
  %v34 = vld [vmem:[%s1 + $0xc] sm:$0xf]
  %v35 = vld [vmem:[%s1 + $0x10] sm:$0xf]
  %v36 = vld [vmem:[%s1 + $0x14] sm:$0xf]
  %v37 = vld [vmem:[%s1 + $0x18] sm:$0xf]
  %v38 = vld [vmem:[%s1 + $0x1c] sm:$0xf]
  %v47 = vunpack.c.l.b16 %v31
  %v48 = vunpack.c.l.b16 %v32
  %v49 = vunpack.c.l.b16 %v33
  %v50 = vunpack.c.l.b16 %v34
  %v51 = vunpack.c.l.b16 %v35
  %v52 = vunpack.c.l.b16 %v36
  %v53 = vunpack.c.l.b16 %v37
  %v54 = vunpack.c.l.b16 %v38
  %v55 = vpack.c.b16 %v48, %v47
  %v56 = vpack.c.b16 %v50, %v49
  %v57 = vpack.c.b16 %v52, %v51
  %v58 = vpack.c.b16 %v54, %v53
  %vm59 = vcmask 31744
  %v61 = vsel %vm59, %v55, 0
  %v64 = vsel %vm59, %v56, 0
  %v67 = vsel %vm59, %v57, 0
  %v70 = vsel %vm59, %v58, 0
  %vm72 = vcmask 1041408
  %v74 = vsel %vm72, %v21, 0
  %76 = vmatprep.subr.bf16.mxu0 0
  %77 = vmatpush1.bf16.msra.mxu0 %v74
  %78 = vmatprep.subr.bf16.mxu0 0
  %79 = vmatpush1.bf16.msra.mxu0 0
  %80 = vmatprep.subr.bf16.mxu0 0
  %81 = vmatpush1.bf16.msra.mxu0 0
  %82 = vmatprep.subr.bf16.mxu0 0
  %83 = vmatpush1.bf16.msra.mxu0 0
  %84 = vmatprep.subr.bf16.mxu0 0
  %85 = vmatpush1.bf16.msra.mxu0 0
  %86 = vmatprep.subr.bf16.mxu0 0
  %87 = vmatpush1.bf16.msra.mxu0 0
  %88 = vmatprep.subr.bf16.mxu0 0
  %89 = vmatpush1.bf16.msra.mxu0 0
  %90 = vmatprep.subr.bf16.mxu0 0
  %91 = vmatpush1.bf16.msra.mxu0 0
  %92 = vmatprep.subr.bf16.mxu0 0
  %93 = vmatpush1.bf16.msra.mxu0 0
  %94 = vmatprep.subr.bf16.mxu0 0
  %95 = vmatpush1.bf16.msra.mxu0 0
  %96 = vmatprep.subr.bf16.mxu0 0
  %97 = vmatpush1.bf16.msra.mxu0 0
  %98 = vmatprep.subr.bf16.mxu0 0
  %99 = vmatpush1.bf16.msra.mxu0 0
  %100 = vmatprep.subr.bf16.mxu0 0
  %101 = vmatpush1.bf16.msra.mxu0 0
  %102 = vmatprep.subr.bf16.mxu0 0
  %103 = vmatpush1.bf16.msra.mxu0 0
  %104 = vmatprep.subr.bf16.mxu0 0
  %105 = vmatpush1.bf16.msra.mxu0 0
  %106 = vmatprep.subr.bf16.mxu0 0
  %107 = vmatpush1.bf16.msra.mxu0 0
  %108 = vmatprep.mubr.bf16.mxu0 0
  %109 = vmatmul.mubr.bf16.gmra.mrb[0].mxu0 %v61
  %v110 = vpop.f32.mrb[0].mxu0
  %v111 = vadd.f32 0.0, %v110
  %v112 = vpop.f32.mrb[0].mxu0
  %v113 = vpop.f32.mrb[0].mxu0
  %v114 = vadd.f32 0.0, %v113
  %v115 = vpop.f32.mrb[0].mxu0
  %116 = vmatprep.mubr.bf16.mxu0 0
  %117 = vmatmul.mubr.bf16.gmra.mrb[0].mxu0 %v64
  %v118 = vpop.f32.mrb[0].mxu0
  %v119 = vadd.f32 0.0, %v118
  %v120 = vpop.f32.mrb[0].mxu0
  %v121 = vpop.f32.mrb[0].mxu0
  %v122 = vadd.f32 0.0, %v121
  %v123 = vpop.f32.mrb[0].mxu0
  %124 = vmatprep.mubr.bf16.mxu0 0
  %125 = vmatmul.mubr.bf16.gmra.mrb[0].mxu0 %v67
  %v126 = vpop.f32.mrb[0].mxu0
  %v127 = vadd.f32 0.0, %v126
  %v128 = vpop.f32.mrb[0].mxu0
  %v129 = vpop.f32.mrb[0].mxu0
  %v130 = vadd.f32 0.0, %v129
  %v131 = vpop.f32.mrb[0].mxu0
  %132 = vmatprep.mubr.bf16.mxu0 0
  %133 = vmatmul.mubr.bf16.gmra.mrb[0].mxu0 %v70
  %v134 = vpop.f32.mrb[0].mxu0
  %v135 = vadd.f32 0.0, %v134
  %v136 = vpop.f32.mrb[0].mxu0
  %v137 = vpop.f32.mrb[0].mxu0
  %v138 = vadd.f32 0.0, %v137
  %v139 = vpop.f32.mrb[0].mxu0
  %140 = vdwg.mxu0
  %v141 = vmax.f32 %v111, 0.0
  %v142 = vmax.f32 %v114, 0.0
  %v143 = vmax.f32 %v119, 0.0
  %v144 = vmax.f32 %v122, 0.0
  %v145 = vmax.f32 %v127, 0.0
  %v146 = vmax.f32 %v130, 0.0
  %v147 = vmax.f32 %v135, 0.0
  %v148 = vmax.f32 %v138, 0.0
  %v149 = vld [vmem:[%s2] sm:$0xf]
  %v150 = vld [vmem:[%s2 + $0x4] sm:$0xf]
  %v151 = vld [vmem:[%s2 + $0x8] sm:$0xf]
  %v152 = vld [vmem:[%s2 + $0xc] sm:$0xf]
  %v153 = vld [vmem:[%s2 + $0x10] sm:$0xf]
  %v154 = vld [vmem:[%s2 + $0x14] sm:$0xf]
  %v155 = vld [vmem:[%s2 + $0x18] sm:$0xf]
  %v156 = vld [vmem:[%s2 + $0x1c] sm:$0xf]
  %v157 = vpack.c.bf16 %v142, %v141
  %v158 = vpack.c.bf16 %v144, %v143
  %v159 = vpack.c.bf16 %v146, %v145
  %v160 = vpack.c.bf16 %v148, %v147
  %162 = vset.pattern.permute.xlu0 0
  %163 = vperm.xlu0 %162, %v22
  %v164 = vpop.permute.xlu0 %163
  %167 = vset.pattern.permute.xlu0 0
  %168 = vperm.xlu0 %167, %v23
  %v169 = vpop.permute.xlu0 %168
  %172 = vset.pattern.permute.xlu0 0
  %173 = vperm.xlu0 %172, %v24
  %v174 = vpop.permute.xlu0 %173
  %177 = vset.pattern.permute.xlu0 0
  %178 = vperm.xlu0 %177, %v25
  %v179 = vpop.permute.xlu0 %178
  %182 = vset.pattern.permute.xlu0 0
  %183 = vperm.xlu0 %182, %v26
  %v184 = vpop.permute.xlu0 %183
  %187 = vset.pattern.permute.xlu0 0
  %188 = vperm.xlu0 %187, %v27
  %v189 = vpop.permute.xlu0 %188
  %192 = vset.pattern.permute.xlu0 0
  %193 = vperm.xlu0 %192, %v28
  %v194 = vpop.permute.xlu0 %193
  %197 = vset.pattern.permute.xlu0 0
  %198 = vperm.xlu0 %197, %v29
  %v199 = vpop.permute.xlu0 %198
  %v209 = vunpack.c.l.b16 %v149
  %v210 = vunpack.c.l.b16 %v150
  %v211 = vunpack.c.l.b16 %v151
  %v212 = vunpack.c.l.b16 %v152
  %v213 = vunpack.c.l.b16 %v153
  %v214 = vunpack.c.l.b16 %v154
  %v215 = vunpack.c.l.b16 %v155
  %v216 = vunpack.c.l.b16 %v156
  %v217 = vpack.c.b16 %v210, %v209
  %v218 = vpack.c.b16 %v212, %v211
  %v219 = vpack.c.b16 %v214, %v213
  %v220 = vpack.c.b16 %v216, %v215
  %vm221 = vcmask 523264
  %v223 = vsel %vm221, %v217, 0
  %v226 = vsel %vm221, %v218, 0
  %v229 = vsel %vm221, %v219, 0
  %v232 = vsel %vm221, %v220, 0
  %234 = vmatprep.subr.bf16.mxu0 0
  %235 = vmatpush1.bf16.msra.mxu0 %v157
  %236 = vmatprep.subr.bf16.mxu0 0
  %237 = vmatpush1.bf16.msra.mxu0 %v158
  %238 = vmatprep.subr.bf16.mxu0 0
  %239 = vmatpush1.bf16.msra.mxu0 %v159
  %240 = vmatprep.subr.bf16.mxu0 0
  %241 = vmatpush1.bf16.msra.mxu0 %v160
  %242 = vmatprep.subr.bf16.mxu0 0
  %243 = vmatpush1.bf16.msra.mxu0 0
  %244 = vmatprep.subr.bf16.mxu0 0
  %245 = vmatpush1.bf16.msra.mxu0 0
  %246 = vmatprep.subr.bf16.mxu0 0
  %247 = vmatpush1.bf16.msra.mxu0 0
  %248 = vmatprep.subr.bf16.mxu0 0
  %249 = vmatpush1.bf16.msra.mxu0 0
  %250 = vmatprep.subr.bf16.mxu0 0
  %251 = vmatpush1.bf16.msra.mxu0 0
  %252 = vmatprep.subr.bf16.mxu0 0
  %253 = vmatpush1.bf16.msra.mxu0 0
  %254 = vmatprep.subr.bf16.mxu0 0
  %255 = vmatpush1.bf16.msra.mxu0 0
  %256 = vmatprep.subr.bf16.mxu0 0
  %257 = vmatpush1.bf16.msra.mxu0 0
  %258 = vmatprep.subr.bf16.mxu0 0
  %259 = vmatpush1.bf16.msra.mxu0 0
  %260 = vmatprep.subr.bf16.mxu0 0
  %261 = vmatpush1.bf16.msra.mxu0 0
  %262 = vmatprep.subr.bf16.mxu0 0
  %263 = vmatpush1.bf16.msra.mxu0 0
  %264 = vmatprep.subr.bf16.mxu0 0
  %265 = vmatpush1.bf16.msra.mxu0 0
  %266 = vmatprep.mubr.bf16.mxu0 0
  %267 = vmatmul.mubr.bf16.gmra.mrb[0].mxu0 %v223
  %v268 = vpop.f32.mrb[0].mxu0
  %v269 = vadd.f32 %v164, %v268
  %v270 = vpop.f32.mrb[0].mxu0
  %v271 = vpop.f32.mrb[0].mxu0
  %v272 = vadd.f32 %v169, %v271
  %v273 = vpop.f32.mrb[0].mxu0
  %274 = vmatprep.mubr.bf16.mxu0 0
  %275 = vmatmul.mubr.bf16.gmra.mrb[0].mxu0 %v226
  %v276 = vpop.f32.mrb[0].mxu0
  %v277 = vadd.f32 %v174, %v276
  %v278 = vpop.f32.mrb[0].mxu0
  %v279 = vpop.f32.mrb[0].mxu0
  %v280 = vadd.f32 %v179, %v279
  %v281 = vpop.f32.mrb[0].mxu0
  %282 = vmatprep.mubr.bf16.mxu0 0
  %283 = vmatmul.mubr.bf16.gmra.mrb[0].mxu0 %v229
  %v284 = vpop.f32.mrb[0].mxu0
  %v285 = vadd.f32 %v184, %v284
  %v286 = vpop.f32.mrb[0].mxu0
  %v287 = vpop.f32.mrb[0].mxu0
  %v288 = vadd.f32 %v189, %v287
  %v289 = vpop.f32.mrb[0].mxu0
  %290 = vmatprep.mubr.bf16.mxu0 0
  %291 = vmatmul.mubr.bf16.gmra.mrb[0].mxu0 %v232
  %v292 = vpop.f32.mrb[0].mxu0
  %v293 = vadd.f32 %v194, %v292
  %v294 = vpop.f32.mrb[0].mxu0
  %v295 = vpop.f32.mrb[0].mxu0
  %v296 = vadd.f32 %v199, %v295
  %v297 = vpop.f32.mrb[0].mxu0
  %298 = vdwg.mxu0
  %v299 = vmax.f32 %v269, 0.0
  %v300 = vmax.f32 %v272, 0.0
  %v301 = vmax.f32 %v277, 0.0
  %v302 = vmax.f32 %v280, 0.0
  %v303 = vmax.f32 %v285, 0.0
  %v304 = vmax.f32 %v288, 0.0
  %v305 = vmax.f32 %v293, 0.0
  %v306 = vmax.f32 %v296, 0.0
  %v307 = vld [vmem:[%s3] sm:$0x1]
  %v308 = vpack.c.bf16 %v300, %v299
  %v309 = vpack.c.bf16 %v302, %v301
  %v310 = vpack.c.bf16 %v304, %v303
  %v311 = vpack.c.bf16 %v306, %v305
  %313 = vset.pattern.permute.xlu0 1
  %314 = vperm.xlu0 %313, %v30
  %v315 = vpop.permute.xlu0 %314
  %v318 = vsel %vm221, %v307, 0
  %320 = vmatprep.subr.bf16.mxu0 0
  %321 = vmatpush1.bf16.msra.mxu0 %v308
  %322 = vmatprep.subr.bf16.mxu0 0
  %323 = vmatpush1.bf16.msra.mxu0 %v309
  %324 = vmatprep.subr.bf16.mxu0 0
  %325 = vmatpush1.bf16.msra.mxu0 %v310
  %326 = vmatprep.subr.bf16.mxu0 0
  %327 = vmatpush1.bf16.msra.mxu0 %v311
  %328 = vmatprep.subr.bf16.mxu0 0
  %329 = vmatpush1.bf16.msra.mxu0 0
  %330 = vmatprep.subr.bf16.mxu0 0
  %331 = vmatpush1.bf16.msra.mxu0 0
  %332 = vmatprep.subr.bf16.mxu0 0
  %333 = vmatpush1.bf16.msra.mxu0 0
  %334 = vmatprep.subr.bf16.mxu0 0
  %335 = vmatpush1.bf16.msra.mxu0 0
  %336 = vmatprep.subr.bf16.mxu0 0
  %337 = vmatpush1.bf16.msra.mxu0 0
  %338 = vmatprep.subr.bf16.mxu0 0
  %339 = vmatpush1.bf16.msra.mxu0 0
  %340 = vmatprep.subr.bf16.mxu0 0
  %341 = vmatpush1.bf16.msra.mxu0 0
  %342 = vmatprep.subr.bf16.mxu0 0
  %343 = vmatpush1.bf16.msra.mxu0 0
  %344 = vmatprep.subr.bf16.mxu0 0
  %345 = vmatpush1.bf16.msra.mxu0 0
  %346 = vmatprep.subr.bf16.mxu0 0
  %347 = vmatpush1.bf16.msra.mxu0 0
  %348 = vmatprep.subr.bf16.mxu0 0
  %349 = vmatpush1.bf16.msra.mxu0 0
  %350 = vmatprep.subr.bf16.mxu0 0
  %351 = vmatpush1.bf16.msra.mxu0 0
  %352 = vmatprep.mubr.bf16.mxu0 0
  %353 = vmatmul.mubr.bf16.gmra.mrb[0].mxu0 %v318
  %v354 = vpop.f32.mrb[0].mxu0
  %v355 = vadd.f32 %v315, %v354
  %v356 = vpop.f32.mrb[0].mxu0
  %v357 = vpop.f32.mrb[0].mxu0
  %v358 = vpop.f32.mrb[0].mxu0
  %359 = vdwg.mxu0
  %360 = vst [vmem:[%s5] sm:$0x3] %v355
  // Predicated region
  $region22: #{algae_mussel_forward.1} parent=0 // pred_check
    _
  $region23: #{algae_mussel_forward.1} parent=0 // pred_check_branch
    %362 = sbr.rel (0) target = $region25
  $region24: #{algae_mussel_forward.1} parent=0 // pred_region
    _
  $region25: #{algae_mussel_forward.1} parent=0 // pred_fallthru
    _
  // Predicated region
  $region26: #{algae_mussel_forward.1} parent=0 // pred_check
    _
  $region27: #{algae_mussel_forward.1} parent=0 // pred_check_branch
    %364 = sbr.rel (0) target = $region29
  $region28: #{algae_mussel_forward.1} parent=0 // pred_region
    _
  $region29: #{algae_mussel_forward.1} parent=0 // pred_fallthru
    _

</llo_original>
